<compile_context>
chip_gen: v5e
topology: v5e:2x2
jax: 0.10.0
libtpu: 0.0.40
codegen_flags: <defaults>
</compile_context>

<pallas_src>
import jax
import jax.numpy as jnp
from jax.experimental import pallas as pl
from jax.experimental.pallas import tpu as pltpu


def _round_up(n, m):
    return ((n + m - 1) // m) * m


# Cap so double-buffered x/out blocks stay ~<= 24 MiB VMEM (safe on v5e/v6e/v7x).
_MAX_B_BLK = 131072


def pack_params(params):
    """Pack (w1,b1,w2,b2,w3,b3) into one (48,16) f32 slab.

    Every piece starts at lane 0 and at a sublane offset, so the in-kernel
    slices are benign static tile sub-selects. One DMA instead of six.
    """
    w1, b1, w2, b2, w3, b3 = params
    slab = jnp.zeros((48, 16), jnp.float32)
    slab = slab.at[0:8, 0:10].set(w1)                     # (8,10)
    slab = slab.at[8:16, 0:1].set(b1.reshape(8, 1))       # (8,1)
    slab = slab.at[16:20, 0:8].set(w2)                    # (4,8)
    slab = slab.at[24:28, 0:1].set(b2.reshape(4, 1))      # (4,1)
    slab = slab.at[32:33, 0:4].set(w3)                    # (1,4)
    slab = slab.at[40:41, 0:1].set(b3.reshape(1, 1))      # (1,1)
    return slab


def tiny_mlp_kernel(x_ref, w_ref, o_ref):
    # Feature-major fused MLP hot path: batch rides the 128-lane axis,
    # weights/biases are static slices of the resident packed slab.
    x = x_ref[...]                                        # (10, Bb)
    w1 = w_ref[0:8, 0:10]                                 # (8, 10)
    b1 = w_ref[8:16, 0:1]                                 # (8, 1)
    w2 = w_ref[16:20, 0:8]                                # (4, 8)
    b2 = w_ref[24:28, 0:1]                                # (4, 1)
    w3 = w_ref[32:33, 0:4]                                # (1, 4)
    b3 = w_ref[40:41, 0:1]                                # (1, 1)

    h1 = jnp.maximum(jnp.dot(w1, x, preferred_element_type=jnp.float32) + b1, 0.0)
    h2 = jnp.maximum(jnp.dot(w2, h1, preferred_element_type=jnp.float32) + b2, 0.0)
    o_ref[...] = jnp.dot(w3, h2, preferred_element_type=jnp.float32) + b3


def _choose_b_blk(batch, b_blk):
    # Enforce the 128-lane rule (robustness fix) and keep >= 2 blocks when
    # possible so the "parallel" batch axis can shard across v7x's 2 TCs.
    b_blk = _round_up(max(b_blk, 128), 128)
    if batch > 128:
        b_blk = min(b_blk, _round_up(pl.cdiv(batch, 2), 128))
    return min(max(b_blk, 128), _MAX_B_BLK)


def _mlp_pallas_fm(x_fm, w_slab, b_blk):
    """Core pallas call: x_fm (10, B) feature-major -> (1, B) feature-major."""
    d_in, batch = x_fm.shape
    assert d_in == 10
    b_blk = _choose_b_blk(batch, b_blk)
    grid = (pl.cdiv(batch, b_blk),)

    # VMEM budget from the padded buffer layout: x block (10,b) pads to 16
    # sublanes, out block (1,b) pads to 8; x2 for double buffering; slack for
    # the weight slab + compiler scratch.  Needed for big blocks on v5e.
    vmem_limit = 2 * (16 + 8) * b_blk * 4 + (4 << 20)

    flops = 2 * (10 * 8 + 8 * 4 + 4 * 1) * batch
    bytes_accessed = (10 + 1) * 4 * batch + int(w_slab.size) * 4

    return pl.pallas_call(
        tiny_mlp_kernel,
        out_shape=jax.ShapeDtypeStruct((1, batch), jnp.float32),
        grid_spec=pltpu.PrefetchScalarGridSpec(
            num_scalar_prefetch=0,
            grid=grid,
            in_specs=[
                # x streams over the batch (lane) axis; Pallas masks the ragged
                # last block, so no wrapper-side pad pass is needed.
                # TODO(synk): if profiling shows exposed DMA, switch to
                # pipeline_mode=pl.Buffered(3) and grow the VMEM budget.
                pl.BlockSpec((10, b_blk), lambda i: (0, i)),
                # Packed weights: constant index_map -> fetched once, resident.
                pl.BlockSpec(w_slab.shape, lambda i: (0, 0)),
            ],
            out_specs=pl.BlockSpec((1, b_blk), lambda i: (0, i)),  # lane-dense
        ),
        compiler_params=pltpu.CompilerParams(
            dimension_semantics=("parallel",),   # shard batch blocks across TCs
            vmem_limit_bytes=int(vmem_limit),
        ),
        cost_estimate=pl.CostEstimate(
            flops=flops, transcendentals=0, bytes_accessed=int(bytes_accessed)),
    )(x_fm, w_slab)


def tiny_model_forward_fm(x_fm, params, *, b_blk=65536):
    """Feature-major entry point: x_fm (10, B) -> (1, B). No extra HBM pass."""
    return _mlp_pallas_fm(x_fm, pack_params(params), b_blk)


def tiny_model_forward(x, params, *, b_blk=65536, small_batch_threshold=2048):
    """x: (B, 10) float32 -> (B, 1) float32. Matches PyTorch TinyModel.forward."""
    B, d_in = x.shape
    assert d_in == 10
    if B < small_batch_threshold:
        # Fixed pallas launch + 128-lane rounding dominate tiny batches.
        return reference_forward(x, params)
    # One transpose pass to feature-major so x/out DMAs are lane-dense.
    # TODO(synk): large-B producers should emit x feature-major and call
    # tiny_model_forward_fm directly (or fuse this transpose with
    # CompilerParams(allow_input_fusion=...)) to avoid this extra HBM pass.
    out_fm = _mlp_pallas_fm(x.T, pack_params(params), b_blk)
    return out_fm.reshape(B, 1)


def init_params(key):
    """Deterministic init mimicking PyTorch nn.Linear defaults, in PyTorch
    layout: W is (out_features, in_features), b is (out_features,)."""
    dims = [(10, 8), (8, 4), (4, 1)]
    params = []
    for fan_in, fan_out in dims:
        key, kw, kb = jax.random.split(key, 3)
        bound = 1.0 / jnp.sqrt(float(fan_in))
        w = jax.random.uniform(kw, (fan_out, fan_in), jnp.float32, -bound, bound)
        b = jax.random.uniform(kb, (fan_out,), jnp.float32, -bound, bound)
        params.extend([w, b])
    return tuple(params)


def reference_forward(x, params):
    """Pure-JAX reference of the same MLP (PyTorch semantics: x @ W.T + b)."""
    w1, b1, w2, b2, w3, b3 = params
    h1 = jnp.maximum(x @ w1.T + b1, 0.0)
    h2 = jnp.maximum(h1 @ w2.T + b2, 0.0)
    return h2 @ w3.T + b3


if __name__ == "__main__":
    key = jax.random.PRNGKey(0)
    key, kx = jax.random.split(key)
    params = init_params(key)

    # 1) Tiny batch: small-batch fast path (pure jnp), PyTorch layout.
    batch = 8
    x = jax.random.normal(kx, (batch, 10), dtype=jnp.float32)
    out = jax.block_until_ready(tiny_model_forward(x, params))
    ref = reference_forward(x, params)
    assert out.shape == (batch, 1)
    assert jnp.allclose(out, ref, atol=1e-5, rtol=1e-5)

    # 2) Force the Pallas path: 3 batch blocks of 128 lanes with a masked
    #    ragged tail (300 = 2*128 + 44), (B,10) -> (B,1) contract.
    key, kx2 = jax.random.split(key)
    batch2 = 300
    x2 = jax.random.normal(kx2, (batch2, 10), dtype=jnp.float32)
    out2 = jax.block_until_ready(
        tiny_model_forward(x2, params, b_blk=128, small_batch_threshold=0))
    ref2 = reference_forward(x2, params)
    assert out2.shape == (batch2, 1)
    assert jnp.allclose(out2, ref2, atol=1e-5, rtol=1e-5)

    # 3) Feature-major entry point (no wrapper transpose): x already (10, B).
    key, kx3 = jax.random.split(key)
    batch3 = 512
    x3_fm = jax.random.normal(kx3, (10, batch3), dtype=jnp.float32)
    out3 = jax.block_until_ready(tiny_model_forward_fm(x3_fm, params, b_blk=256))
    ref3 = reference_forward(x3_fm.T, params).T
    assert out3.shape == (1, batch3)
    assert jnp.allclose(out3, ref3, atol=1e-5, rtol=1e-5)

    print("KERNEL_OK")
</pallas_src>

<mosaic_0001>
module attributes {stable_mosaic.version = 11 : i64} {
  func.func @tiny_mlp_kernel(%arg0: i32, %arg1: memref<10x128xf32, #tpu.memory_space<vmem>>, %arg2: memref<48x16xf32, #tpu.memory_space<vmem>>, %arg3: memref<1x128xf32, #tpu.memory_space<vmem>>) attributes {dimension_semantics = [#tpu.dimension_semantics<parallel>], iteration_bounds = array<i64: 3>, scalar_prefetch = 0 : i64, scratch_operands = 0 : i64, tpu.core_type = #tpu.core_type<tc>, window_params = [{transform_indices = @transform_0, window_bounds = array<i64: 10, 128>}, {pipeline_mode = #tpu.pipeline_mode<synchronous>, transform_indices = @transform_1, window_bounds = array<i64: 48, 16>}, {transform_indices = @transform_2, window_bounds = array<i64: 1, 128>}]} {
    %c0 = arith.constant 0 : index
    %c0_0 = arith.constant 0 : index
    %0 = vector.load %arg1[%c0, %c0_0] : memref<10x128xf32, #tpu.memory_space<vmem>>, vector<10x128xf32>
    %c0_1 = arith.constant 0 : index
    %c0_2 = arith.constant 0 : index
    %1 = vector.load %arg2[%c0_1, %c0_2] : memref<48x16xf32, #tpu.memory_space<vmem>>, vector<8x10xf32>
    %c8 = arith.constant 8 : index
    %c0_3 = arith.constant 0 : index
    %2 = vector.load %arg2[%c8, %c0_3] : memref<48x16xf32, #tpu.memory_space<vmem>>, vector<8x1xf32>
    %c16 = arith.constant 16 : index
    %c0_4 = arith.constant 0 : index
    %3 = vector.load %arg2[%c16, %c0_4] : memref<48x16xf32, #tpu.memory_space<vmem>>, vector<4x8xf32>
    %c24 = arith.constant 24 : index
    %c0_5 = arith.constant 0 : index
    %4 = vector.load %arg2[%c24, %c0_5] : memref<48x16xf32, #tpu.memory_space<vmem>>, vector<4x1xf32>
    %c32 = arith.constant 32 : index
    %c0_6 = arith.constant 0 : index
    %5 = vector.load %arg2[%c32, %c0_6] : memref<48x16xf32, #tpu.memory_space<vmem>>, vector<1x4xf32>
    %c40 = arith.constant 40 : index
    %c0_7 = arith.constant 0 : index
    %6 = vector.load %arg2[%c40, %c0_7] : memref<48x16xf32, #tpu.memory_space<vmem>>, vector<1x1xf32>
    %cst = arith.constant dense<0.000000e+00> : vector<8x128xf32>
    %7 = tpu.matmul %1, %0, %cst {dimension_numbers = #tpu.dot_dimension_numbers<[1], [0], [0], [1], [0, 0, 1, 1], [], []>} : vector<8x10xf32>, vector<10x128xf32>, vector<8x128xf32> -> vector<8x128xf32>
    %8 = vector.broadcast %2 : vector<8x1xf32> to vector<8x128xf32>
    %9 = arith.addf %7, %8 : vector<8x128xf32>
    %cst_8 = arith.constant 0.000000e+00 : f32
    %10 = vector.broadcast %cst_8 : f32 to vector<8x128xf32>
    %11 = arith.maximumf %9, %10 : vector<8x128xf32>
    %cst_9 = arith.constant dense<0.000000e+00> : vector<4x128xf32>
    %12 = tpu.matmul %3, %11, %cst_9 {dimension_numbers = #tpu.dot_dimension_numbers<[1], [0], [0], [1], [0, 0, 1, 1], [], []>} : vector<4x8xf32>, vector<8x128xf32>, vector<4x128xf32> -> vector<4x128xf32>
    %13 = vector.broadcast %4 : vector<4x1xf32> to vector<4x128xf32>
    %14 = arith.addf %12, %13 : vector<4x128xf32>
    %cst_10 = arith.constant 0.000000e+00 : f32
    %15 = vector.broadcast %cst_10 : f32 to vector<4x128xf32>
    %16 = arith.maximumf %14, %15 : vector<4x128xf32>
    %cst_11 = arith.constant dense<0.000000e+00> : vector<1x128xf32>
    %17 = tpu.matmul %5, %16, %cst_11 {dimension_numbers = #tpu.dot_dimension_numbers<[1], [0], [0], [1], [0, 0, 1, 1], [], []>} : vector<1x4xf32>, vector<4x128xf32>, vector<1x128xf32> -> vector<1x128xf32>
    %18 = vector.broadcast %6 : vector<1x1xf32> to vector<1x128xf32>
    %19 = arith.addf %17, %18 : vector<1x128xf32>
    %c0_12 = arith.constant 0 : index
    %c0_13 = arith.constant 0 : index
    %20 = vector.load %arg3[%c0_12, %c0_13] : memref<1x128xf32, #tpu.memory_space<vmem>>, vector<1x128xf32>
    tpu.vector_store %arg3[%c0_12, %c0_13], %19 {strides = array<i32>} : memref<1x128xf32, #tpu.memory_space<vmem>>, vector<1x128xf32>,
    return
  }
  func.func @transform_0(%arg0: i32) -> (i32, i32) {
    %c0_i32 = arith.constant 0 : i32
    %c0_i32_0 = arith.constant 0 : i32
    return %c0_i32, %arg0 : i32, i32
  }
  func.func @transform_1(%arg0: i32) -> (i32, i32) {
    %c0_i32 = arith.constant 0 : i32
    %c0_i32_0 = arith.constant 0 : i32
    %c0_i32_1 = arith.constant 0 : i32
    return %c0_i32, %c0_i32_0 : i32, i32
  }
  func.func @transform_2(%arg0: i32) -> (i32, i32) {
    %c0_i32 = arith.constant 0 : i32
    %c0_i32_0 = arith.constant 0 : i32
    return %c0_i32, %arg0 : i32, i32
  }
}

</mosaic_0001>

<llo_original>
// kernel: tpu_custom_call.1
$region0: #{tpu_custom_call.1}
  #allocation0 [shape = 'u32[]', space=smem, size = 0x4, offset = 0x4, fixed_abs, tag = 'smem constant byte address 0x4 - core index']
  #allocation1 [shape = 'u32[72,128]{1,0:T(1,128)}', space=vmem, size = 0x9000, scoped, tag = 'internal scratch']
  %s0 = inlined_call_operand.vmem [shape: f32[10,300], index: 0, kind: input, shape index: {}]
  %s1 = inlined_call_operand.vmem [shape: f32[48,16], index: 1, kind: input, shape index: {}]
  %s2 = inlined_call_operand.hbm [shape: f32[1,300], index: 2, kind: output, shape index: {}]
  %s3 = sld [smem:[#allocation0]]
  $region79: #{tpu_custom_call.1} parent=0
    _
  %s5 = ssub.s32 1, %s3
  %s6 = scalar_select 0, %s5, %s3
  $region1: #{tpu_custom_call.1} parent=0
    #allocation2 [shape = 'u8[16384]{0}', space=vmem, size = 0x4000, scoped, tag = 'input window, operand 0']
    #allocation3 [shape = 'u8[1024]{0}', space=vmem, size = 0x400, scoped, tag = 'output window, operand 0']
    #allocation4 [shape = 's32[2]{0}', space=sflag, size = 0x8, scoped, tag = 'scoped memory for tpu_custom_call.1']
    %7 = vsyncpa [#allocation4], 0
    %s8 = scalar_lea.sflag [#allocation4], 1
    %9 = vsyncpa %s8, 0
    loop: start=0, step=1, limit=5
    $region2: #{tpu_custom_call.1} parent=1 // loop_pre_header
      _
    $region3: #{tpu_custom_call.1} parent=1 // loop_header
      %s11 = sphi 0, %s15
      %p12 = scmp.ge.s32.totalorder %s11, 5
      %s21 = sphi 0, %s23
      %s24 = sphi 0, %s21
      %s25 = sphi 0, %s24
      %s41 = sphi 0, %s25
      %s45 = sphi 0, %s45
      %s47 = sphi 0, %s45
      %s48 = sphi 0, %s47
      %s62 = sphi 0, %s48
      %s68 = sphi 0, %s70
      %s71 = sphi 0, %s68
      %s72 = sphi 0, %s71
      %s88 = sphi 0, %s72
    $region4: #{tpu_custom_call.1} parent=1 // loop_header_branch
      %14 = sbr.rel (%p12) target = $region8
    $region5: #{tpu_custom_call.1} parent=1 // loop_body
      %s16 = ssub.s32 %s11, 1
      %s17 = ssub.s32 %s11, 2
      %s18 = sadd.s32 %s11, 1
      %s19 = ssub.s32 %s11, %s18
      %p20 = scmp.eq.s32.totalorder %s19, 0
      %s22 = sadd.s32 %s21, 1
      %s23 = scalar_select %p20, %s21, %s22
      %p26 = pneg %p20
      %p27 = scmp.eq.s32.totalorder %s11, 2
      %p28 = por %p26, %p27
      %p29 = scmp.ne.s32.totalorder %s21, %s24
      %p30 = scmp.eq.s32.totalorder %s11, 0
      %p31 = por %p29, %p30
      %p32 = scmp.ne.s32.totalorder %s21, %s24
      %p33 = scmp.eq.s32.totalorder %s16, 2
      %p34 = por %p32, %p33
      %p35 = scmp.ne.s32.totalorder %s24, %s25
      %p36 = scmp.eq.s32.totalorder %s16, 0
      %p37 = por %p35, %p36
      %p38 = scmp.ne.s32.totalorder %s24, %s25
      %p39 = scmp.eq.s32.totalorder %s17, 2
      %p40 = por %p38, %p39
      %p42 = scmp.ne.s32.totalorder %s25, %s41
      %p43 = scmp.eq.s32.totalorder %s17, 0
      %p44 = por %p42, %p43
      %s46 = sadd.s32 %s45, 1
      %p49 = scmp.eq.s32.totalorder %s11, 2
      %p50 = scmp.ne.s32.totalorder %s45, %s47
      %p51 = scmp.eq.s32.totalorder %s11, 0
      %p52 = por %p50, %p51
      %p53 = scmp.ne.s32.totalorder %s45, %s47
      %p54 = scmp.eq.s32.totalorder %s16, 2
      %p55 = por %p53, %p54
      %p56 = scmp.ne.s32.totalorder %s47, %s48
      %p57 = scmp.eq.s32.totalorder %s16, 0
      %p58 = por %p56, %p57
      %p59 = scmp.ne.s32.totalorder %s47, %s48
      %p60 = scmp.eq.s32.totalorder %s17, 2
      %p61 = por %p59, %p60
      %p63 = scmp.ne.s32.totalorder %s48, %s62
      %p64 = scmp.eq.s32.totalorder %s17, 0
      %p65 = por %p63, %p64
      %s66 = ssub.s32 %s11, %s18
      %p67 = scmp.eq.s32.totalorder %s66, 0
      %s69 = sadd.s32 %s68, 1
      %s70 = scalar_select %p67, %s68, %s69
      %p73 = pneg %p67
      %p74 = scmp.eq.s32.totalorder %s11, 2
      %p75 = por %p73, %p74
      %p76 = scmp.ne.s32.totalorder %s68, %s71
      %p77 = scmp.eq.s32.totalorder %s11, 0
      %p78 = por %p76, %p77
      %p79 = scmp.ne.s32.totalorder %s68, %s71
      %p80 = scmp.eq.s32.totalorder %s16, 2
      %p81 = por %p79, %p80
      %p82 = scmp.ne.s32.totalorder %s71, %s72
      %p83 = scmp.eq.s32.totalorder %s16, 0
      %p84 = por %p82, %p83
      %p85 = scmp.ne.s32.totalorder %s71, %s72
      %p86 = scmp.eq.s32.totalorder %s17, 2
      %p87 = por %p85, %p86
      %p89 = scmp.ne.s32.totalorder %s72, %s88
      %p90 = scmp.eq.s32.totalorder %s17, 0
      %p91 = por %p89, %p90
      %p92 = scmp.le.s32.totalorder 1, %s11
      %p93 = scmp.lt.s32.totalorder %s11, 4
      %p94 = pnand %p92, %p93
      %p95 = pneg %p94
      // Predicated region
      $region9: #{tpu_custom_call.1} parent=5 // pred_check
        _
      $region10: #{tpu_custom_call.1} parent=5 // pred_check_branch
        %97 = sbr.rel (%p94) target = $region12
      $region11: #{tpu_custom_call.1} parent=5 // pred_region
        %s98 = ssub.s32 %s11, 1
        // Predicated region
        $region13: #{tpu_custom_call.1} parent=11 // pred_check
          %p99 = pneg %p58
        $region14: #{tpu_custom_call.1} parent=11 // pred_check_branch
          %101 = sbr.rel (%p99) target = $region16
        $region15: #{tpu_custom_call.1} parent=11 // pred_region
          _
        $region16: #{tpu_custom_call.1} parent=11 // pred_fallthru
          _
      $region12: #{tpu_custom_call.1} parent=5 // pred_fallthru
        _
      %p102 = scmp.lt.s32.totalorder %s11, 3
      // Predicated region
      $region17: #{tpu_custom_call.1} parent=5 // pred_check
        %p103 = pneg %p102
      $region18: #{tpu_custom_call.1} parent=5 // pred_check_branch
        %105 = sbr.rel (%p103) target = $region20
      $region19: #{tpu_custom_call.1} parent=5 // pred_region
        // Predicated region
        $region21: #{tpu_custom_call.1} parent=19 // pred_check
          %p106 = pneg %p31
        $region22: #{tpu_custom_call.1} parent=19 // pred_check_branch
          %108 = sbr.rel (%p106) target = $region24
        $region23: #{tpu_custom_call.1} parent=19 // pred_region
          %s109 = sand.u32 %s21, 1
          %s110 = sand.u32 %s21, 1
          %s111 = smul.addr %s110, 16
          %s112 = scalar_lea.vmem [#allocation2], %s111
          %s113 = smul.addr %s11, 8
          %s114 = scalar_lea.vmem %s0, %s113
          // Predicated region
          $region25: #{tpu_custom_call.1} parent=23 // pred_check
            _
          $region26: #{tpu_custom_call.1} parent=23 // pred_check_branch
            %116 = sbr.rel (0) target = $region28
          $region27: #{tpu_custom_call.1} parent=23 // pred_region
            // Predicated region
            $region29: #{tpu_custom_call.1} parent=27 // pred_check
              _
            $region30: #{tpu_custom_call.1} parent=27 // pred_check_branch
              %118 = sbr.rel (0) target = $region32
            $region31: #{tpu_custom_call.1} parent=27 // pred_region
              // Predicated region
              $region44: #{tpu_custom_call.1} parent=31 // pred_check
                _
              $region45: #{tpu_custom_call.1} parent=31 // pred_check_branch
                %136 = sbr.rel (0) target = $region47
              $region46: #{tpu_custom_call.1} parent=31 // pred_region
                loop: start=0, step=1, limit=1
                $region48: #{tpu_custom_call.1} parent=46 // loop_pre_header
                  _
                $region49: #{tpu_custom_call.1} parent=46 // loop_header
                  %s138 = sphi 0, %s142
                  %p139 = scmp.ge.s32.totalorder %s138, 1
                  %s143 = sphi %s114, %s114
                  %s144 = sphi %s112, %s112
                $region50: #{tpu_custom_call.1} parent=46 // loop_header_branch
                  %141 = sbr.rel (%p139) target = $region54
                $region51: #{tpu_custom_call.1} parent=46 // loop_body
                  %v145 = vld [vmem:[%s143] sm:$0xff]
                  %146 = vst [vmem:[%s144] sm:$0xff] %v145
                  %v147 = vld [vmem:[%s143 + $0x18] sm:$0xff]
                  %148 = vst [vmem:[%s144 + $0x8] sm:$0xff] %v147
                $region52: #{tpu_custom_call.1} parent=46 // loop_footer
                  %s142 = sadd.s32 1, %s138
                $region53: #{tpu_custom_call.1} parent=46 // loop_footer_branch
                  %137 = sbr.rel target = $region49
                $region54: #{tpu_custom_call.1} parent=46 // loop_exit
                  _
              $region47: #{tpu_custom_call.1} parent=31 // pred_fallthru
                _
              // Predicated region
              $region55: #{tpu_custom_call.1} parent=31 // pred_check
                _
              $region56: #{tpu_custom_call.1} parent=31 // pred_check_branch
                %150 = sbr.rel target = $region58
              $region57: #{tpu_custom_call.1} parent=31 // pred_region
                _
              $region58: #{tpu_custom_call.1} parent=31 // pred_fallthru
                _
            $region32: #{tpu_custom_call.1} parent=27 // pred_fallthru
              _
            // Predicated region
            $region33: #{tpu_custom_call.1} parent=27 // pred_check
              _
            $region34: #{tpu_custom_call.1} parent=27 // pred_check_branch
              %120 = sbr.rel target = $region36
            $region35: #{tpu_custom_call.1} parent=27 // pred_region
              %s122 = ssub.s32 256, 1
              loop: start=0, step=1, limit=1
              $region37: #{tpu_custom_call.1} parent=35 // loop_pre_header
                _
              $region38: #{tpu_custom_call.1} parent=35 // loop_header
                %s124 = sphi 0, %s128
                %p125 = scmp.ge.s32.totalorder %s124, 1
                %s129 = sphi %s114, %s114
                %s130 = sphi %s112, %s112
              $region39: #{tpu_custom_call.1} parent=35 // loop_header_branch
                %127 = sbr.rel (%p125) target = $region43
              $region40: #{tpu_custom_call.1} parent=35 // loop_body
                %v131 = vld [vmem:[%s129] sm:%s122]
                %132 = vst [vmem:[%s130] sm:%s122] %v131
                %v133 = vld [vmem:[%s129 + $0x18] sm:%s122]
                %134 = vst [vmem:[%s130 + $0x8] sm:%s122] %v133
              $region41: #{tpu_custom_call.1} parent=35 // loop_footer
                %s128 = sadd.s32 1, %s124
              $region42: #{tpu_custom_call.1} parent=35 // loop_footer_branch
                %123 = sbr.rel target = $region38
              $region43: #{tpu_custom_call.1} parent=35 // loop_exit
                _
            $region36: #{tpu_custom_call.1} parent=27 // pred_fallthru
              _
          $region28: #{tpu_custom_call.1} parent=23 // pred_fallthru
            _
          %151 = vnop
        $region24: #{tpu_custom_call.1} parent=19 // pred_fallthru
          _
      $region20: #{tpu_custom_call.1} parent=5 // pred_fallthru
        _
      %p152 = scmp.le.s32.totalorder 1, %s11
      %p153 = scmp.lt.s32.totalorder %s11, 4
      %p154 = pnand %p152, %p153
      %p155 = pneg %p154
      // Predicated region
      $region59: #{tpu_custom_call.1} parent=5 // pred_check
        _
      $region60: #{tpu_custom_call.1} parent=5 // pred_check_branch
        %157 = sbr.rel (%p154) target = $region62
      $region61: #{tpu_custom_call.1} parent=5 // pred_region
        %s158 = ssub.s32 %s11, 1
        %s159 = sand.u32 %s24, 1
        %s160 = sand.u32 %s24, 1
        %s161 = smul.addr %s160, 16
        %s162 = scalar_lea.vmem [#allocation2], %s161
        // Predicated region
        $region63: #{tpu_custom_call.1} parent=61 // pred_check
          %p163 = pneg %p37
        $region64: #{tpu_custom_call.1} parent=61 // pred_check_branch
          %165 = sbr.rel (%p163) target = $region66
        $region65: #{tpu_custom_call.1} parent=61 // pred_region
          _
        $region66: #{tpu_custom_call.1} parent=61 // pred_fallthru
          _
        %s166 = sand.u32 %s24, 1
        %s167 = sand.u32 %s24, 1
        %s168 = smul.addr %s167, 16
        %s169 = scalar_lea.vmem [#allocation2], %s168
        %p170 = pneg %p37
        %p171 = pneg %p34
        %p172 = pneg %p58
        %p173 = pneg %p55
        %p174 = pneg %p84
        %p175 = pneg %p81
        %s176 = sand.u32 %s71, 1
        %s177 = scalar_lea.sflag [#allocation4], %s176
        %s178 = sand.u32 %s71, 1
        %s179 = scalar_lea.vmem [#allocation3], %s178
        %v180 = vld [vmem:[%s162] sm:$0xff]
        %v181 = vld [vmem:[%s162 + $0x8] sm:$0x3]
        %v182 = vld [vmem:[%s1] sm:$0xff]
        %v183 = vld [vmem:[%s1 + $0x8] sm:$0xff]
        %v184 = vld [vmem:[%s1 + $0x10] sm:$0xf]
        %v185 = vld [vmem:[%s1 + $0x18] sm:$0xf]
        %v186 = vld [vmem:[%s1 + $0x20] sm:$0x1]
        %v187 = vld [vmem:[%s1 + $0x28] sm:$0x1]
        %189 = vset.pattern.permute.xlu0 0
        %190 = vperm.xlu0 %189, %v183
        %v191 = vpop.permute.xlu0 %190
        %vm193 = vcmask 80896
        %v195 = vsel %vm193, %v182, 0
        %vm197 = vcmask 1041408
        %v199 = vsel %vm197, %v181, 0
        %201 = vmatpush.msra.mxu0 0.0
        %202 = vmatpush.msra.mxu0 0.0
        %203 = vmatpush.msra.mxu0 0.0
        %204 = vmatpush.msra.mxu0 0.0
        %205 = vmatpush.msra.mxu0 0.0
        %206 = vmatpush.msra.mxu0 0.0
        %207 = vmatpush.msra.mxu0 0.0
        %208 = vmatpush.msra.mxu0 0.0
        %209 = vmatpush.msra.mxu0 0.0
        %210 = vmatpush.msra.mxu0 0.0
        %211 = vmatpush.msra.mxu0 0.0
        %212 = vmatpush.msra.mxu0 0.0
        %213 = vmatpush.msra.mxu0 0.0
        %214 = vmatpush.msra.mxu0 0.0
        %215 = vmatpush.msra.mxu0 %v199
        %216 = vmatpush.msra.mxu0 %v180
        %217 = vmatmul.f32.gmra.mxu0 %v195
        %v218 = vpop.f32.mrf.mxu0
        %v219 = vadd.f32 %v191, %v218
        %220 = vdwg.mxu0
        %v221 = vmax.f32 %v219, 0.0
        %223 = vset.pattern.permute.xlu0 0
        %224 = vperm.xlu0 %223, %v185
        %v225 = vpop.permute.xlu0 %224
        %vm227 = vcmask 64512
        %v229 = vsel %vm227, %v184, 0
        %231 = vmatpush.msra.mxu0 0.0
        %232 = vmatpush.msra.mxu0 0.0
        %233 = vmatpush.msra.mxu0 0.0
        %234 = vmatpush.msra.mxu0 0.0
        %235 = vmatpush.msra.mxu0 0.0
        %236 = vmatpush.msra.mxu0 0.0
        %237 = vmatpush.msra.mxu0 0.0
        %238 = vmatpush.msra.mxu0 0.0
        %239 = vmatpush.msra.mxu0 0.0
        %240 = vmatpush.msra.mxu0 0.0
        %241 = vmatpush.msra.mxu0 0.0
        %242 = vmatpush.msra.mxu0 0.0
        %243 = vmatpush.msra.mxu0 0.0
        %244 = vmatpush.msra.mxu0 0.0
        %245 = vmatpush.msra.mxu0 0.0
        %246 = vmatpush.msra.mxu0 %v221
        %247 = vmatmul.f32.gmra.mxu0 %v229
        %v248 = vpop.f32.mrf.mxu0
        %v249 = vadd.f32 %v225, %v248
        %250 = vdwg.mxu0
        %v251 = vmax.f32 %v249, 0.0
        %253 = vset.pattern.permute.xlu0 0
        %254 = vperm.xlu0 %253, %v187
        %v255 = vpop.permute.xlu0 %254
        %vm257 = vcmask 31744
        %v259 = vsel %vm257, %v186, 0
        %vm261 = vcmask 1043456
        %v263 = vsel %vm261, %v251, 0
        %265 = vmatpush.msra.mxu0 0.0
        %266 = vmatpush.msra.mxu0 0.0
        %267 = vmatpush.msra.mxu0 0.0
        %268 = vmatpush.msra.mxu0 0.0
        %269 = vmatpush.msra.mxu0 0.0
        %270 = vmatpush.msra.mxu0 0.0
        %271 = vmatpush.msra.mxu0 0.0
        %272 = vmatpush.msra.mxu0 0.0
        %273 = vmatpush.msra.mxu0 0.0
        %274 = vmatpush.msra.mxu0 0.0
        %275 = vmatpush.msra.mxu0 0.0
        %276 = vmatpush.msra.mxu0 0.0
        %277 = vmatpush.msra.mxu0 0.0
        %278 = vmatpush.msra.mxu0 0.0
        %279 = vmatpush.msra.mxu0 0.0
        %280 = vmatpush.msra.mxu0 %v263
        %281 = vmatmul.f32.gmra.mxu0 %v259
        %v282 = vpop.f32.mrf.mxu0
        %v283 = vadd.f32 %v255, %v282
        %284 = vdwg.mxu0
        %285 = vst [vmem:[%s179] sm:$0x1] %v283
        %s286 = sand.u32 %s71, 1
        %s287 = scalar_lea.sflag [#allocation4], %s286
        %s288 = sand.u32 %s71, 1
        %s289 = scalar_lea.vmem [#allocation3], %s288
        // Predicated region
        $region67: #{tpu_custom_call.1} parent=61 // pred_check
          %p290 = pneg %p81
        $region68: #{tpu_custom_call.1} parent=61 // pred_check_branch
          %292 = sbr.rel (%p290) target = $region70
        $region69: #{tpu_custom_call.1} parent=61 // pred_region
          %294 = vsyncadd %s287, 0
          %s295 = scalar_lea.hbm %s2, %s16
          %s297 = sshll.u32 %s289, 4
          %s298 = int_to_ptr.vmem [resolvable:$true] %s297
          %s299 = sshll.u32 %s295, 4
          %s300 = int_to_ptr.hbm [resolvable:$true] %s299
          %302 = dma.vmem_to_hbm [thread:$0]  %s298, 16, %s300, %s287
        $region70: #{tpu_custom_call.1} parent=61 // pred_fallthru
          _
      $region62: #{tpu_custom_call.1} parent=5 // pred_fallthru
        _
      %p303 = scmp.le.s32.totalorder 2, %s11
      // Predicated region
      $region71: #{tpu_custom_call.1} parent=5 // pred_check
        %p304 = pneg %p303
      $region72: #{tpu_custom_call.1} parent=5 // pred_check_branch
        %306 = sbr.rel (%p304) target = $region74
      $region73: #{tpu_custom_call.1} parent=5 // pred_region
        %s307 = ssub.s32 %s11, 2
        // Predicated region
        $region75: #{tpu_custom_call.1} parent=73 // pred_check
          %p308 = pneg %p87
        $region76: #{tpu_custom_call.1} parent=73 // pred_check_branch
          %310 = sbr.rel (%p308) target = $region78
        $region77: #{tpu_custom_call.1} parent=73 // pred_region
          %s311 = sand.u32 %s72, 1
          %s312 = scalar_lea.sflag [#allocation4], %s311
          %s313 = sand.u32 %s72, 1
          %s314 = scalar_lea.vmem [#allocation3], %s313
          %316 = dma.done %s312, 16
        $region78: #{tpu_custom_call.1} parent=73 // pred_fallthru
          _
      $region74: #{tpu_custom_call.1} parent=5 // pred_fallthru
        _
    $region6: #{tpu_custom_call.1} parent=1 // loop_footer
      %s15 = sadd.s32 1, %s11
    $region7: #{tpu_custom_call.1} parent=1 // loop_footer_branch
      %10 = sbr.rel target = $region3
    $region8: #{tpu_custom_call.1} parent=1 // loop_exit
      _
    %317 = vsyncpa [#allocation4], 1
    %s318 = scalar_lea.sflag [#allocation4], 1
    %319 = vsyncpa %s318, 1

</llo_original>
